<compile_context>
chip_gen: v7x
topology: tpu7x:2x2x1
jax: 0.10.0
libtpu: 0.0.40
codegen_flags: <defaults>
</compile_context>

<pallas_src>
import math

import jax
import jax.numpy as jnp
from jax.experimental import pallas as pl
from jax.experimental.pallas import tpu as pltpu


def _round_up(x: int, m: int) -> int:
    return ((x + m - 1) // m) * m


def _fourier_kernel(t_ref, b2_ref, phase_ref, o_ref):
    # t_ref:     (TN, input_dim)      f32
    # b2_ref:    (input_dim, 2*M)     f32   (already scaled by 2*pi, duplicated [B|B])
    # phase_ref: (1, 2*M)             f32   ([0]*M + [pi/2]*M)
    # o_ref:     (TN, 2*M)            f32
    x_proj = jnp.dot(t_ref[...], b2_ref[...], preferred_element_type=jnp.float32)
    # sin(x)       for the first M lanes,
    # sin(x+pi/2)  = cos(x) for the last M lanes  -> one full-width, lane-dense store.
    o_ref[...] = jnp.sin(x_proj + phase_ref[...])


def fourier_features(t: jax.Array, B: jax.Array, *, tile_n: int = 1024) -> jax.Array:
    """Pallas implementation of FourierFeatures.forward."""
    if t.ndim == 1:
        t = t[:, None]
    t = t.astype(jnp.float32)
    B = B.astype(jnp.float32)

    n, input_dim = t.shape
    assert B.shape[0] == input_dim
    mapping_size = B.shape[1]
    two_m = 2 * mapping_size

    # Augmented projection matrix: 2*pi * [B | B], and the pi/2 phase bias so a single
    # sin() covers both sin and cos halves of the output.
    b2 = (2.0 * math.pi) * jnp.concatenate([B, B], axis=1)           # (input_dim, 2M)
    phase = jnp.concatenate(
        [jnp.zeros((mapping_size,), jnp.float32),
         jnp.full((mapping_size,), 0.5 * math.pi, jnp.float32)]
    )[None, :]                                                        # (1, 2M)

    # --- Tile sizing -------------------------------------------------------
    # Keep the per-buffer VMEM footprint modest (in + out, double-buffered) so the
    # same tile is safe on v7x's smaller (64 MiB physical / 32 MiB scoped) VMEM.
    max_tile_bytes = 4 * 1024 * 1024                      # per-buffer budget (~4 MiB)
    bytes_per_row = (input_dim + two_m) * 4
    tile_cap = max(8, (max_tile_bytes // max(bytes_per_row, 1)) // 8 * 8)
    tile_n_eff = min(max(8, (tile_n // 8) * 8), tile_cap, _round_up(n, 8))

    # Pad N up to a multiple of the tile so every block is full; padded rows are
    # computed (cheaply, on zeros) and sliced off afterwards.
    n_pad = _round_up(n, tile_n_eff)
    if n_pad != n:
        t = jnp.pad(t, ((0, n_pad - n), (0, 0)))

    grid = (n_pad // tile_n_eff,)

    cost = pl.CostEstimate(
        flops=2 * n_pad * input_dim * two_m + n_pad * two_m,
        transcendentals=n_pad * two_m,
        bytes_accessed=4 * (n_pad * input_dim + input_dim * two_m + two_m + n_pad * two_m),
    )

    out = pl.pallas_call(
        _fourier_kernel,
        out_shape=jax.ShapeDtypeStruct((n_pad, two_m), jnp.float32),
        grid_spec=pltpu.PrefetchScalarGridSpec(
            num_scalar_prefetch=0,
            grid=grid,
            in_specs=[
                pl.BlockSpec((tile_n_eff, input_dim), lambda i: (i, 0)),
                pl.BlockSpec((input_dim, two_m), lambda i: (0, 0)),
                pl.BlockSpec((1, two_m), lambda i: (0, 0)),
            ],
            out_specs=pl.BlockSpec((tile_n_eff, two_m), lambda i: (i, 0)),
        ),
        compiler_params=pltpu.CompilerParams(
            dimension_semantics=("parallel",),
        ),
        cost_estimate=cost,
    )(t, b2, phase)

    if n_pad != n:
        out = out[:n]
    return out


if __name__ == "__main__":
    # Deterministic parameter init (mirrors torch.randn((input_dim, mapping_size)) * scale)
    input_dim = 4
    mapping_size = 64
    scale = 10.0
    n = 16

    key = jax.random.PRNGKey(0)
    k_b, k_t = jax.random.split(key)
    B = jax.random.normal(k_b, (input_dim, mapping_size), dtype=jnp.float32) * scale
    t = jax.random.normal(k_t, (n, input_dim), dtype=jnp.float32)

    out = fourier_features(t, B)
    out = jax.block_until_ready(out)

    # Reference check (pure JAX)
    x_proj = 2.0 * math.pi * (t.astype(jnp.float32) @ B)
    ref = jnp.concatenate([jnp.sin(x_proj), jnp.cos(x_proj)], axis=-1)
    assert out.shape == (n, 2 * mapping_size)
    assert jnp.allclose(out, ref, atol=1e-4, rtol=1e-4)

    # Also exercise the 1-D input path (t.dim() == 1 in the torch module)
    B1 = jax.random.normal(k_b, (1, mapping_size), dtype=jnp.float32) * scale
    t1 = jax.random.normal(k_t, (n,), dtype=jnp.float32)
    out1 = jax.block_until_ready(fourier_features(t1, B1))
    x_proj1 = 2.0 * math.pi * (t1[:, None] @ B1)
    ref1 = jnp.concatenate([jnp.sin(x_proj1), jnp.cos(x_proj1)], axis=-1)
    assert jnp.allclose(out1, ref1, atol=1e-4, rtol=1e-4)

    # Exercise multi-tile + ragged-N path (padding + slice) with a non-multiple N.
    n2 = 200
    t2 = jax.random.normal(jax.random.PRNGKey(2), (n2, input_dim), dtype=jnp.float32)
    out2 = jax.block_until_ready(fourier_features(t2, B, tile_n=64))
    x_proj2 = 2.0 * math.pi * (t2 @ B)
    ref2 = jnp.concatenate([jnp.sin(x_proj2), jnp.cos(x_proj2)], axis=-1)
    assert out2.shape == (n2, 2 * mapping_size)
    assert jnp.allclose(out2, ref2, atol=1e-4, rtol=1e-4)

    print("KERNEL_OK")
</pallas_src>

<mosaic_0001>
module attributes {stable_mosaic.version = 11 : i64} {
  func.func @_fourier_kernel(%arg0: i32, %arg1: memref<16x4xf32, #tpu.memory_space<vmem>>, %arg2: memref<4x128xf32, #tpu.memory_space<vmem>>, %arg3: memref<1x128xf32, #tpu.memory_space<vmem>>, %arg4: memref<16x128xf32, #tpu.memory_space<vmem>>) attributes {dimension_semantics = [#tpu.dimension_semantics<parallel>], iteration_bounds = array<i64: 1>, scalar_prefetch = 0 : i64, scratch_operands = 0 : i64, tpu.core_type = #tpu.core_type<tc>, window_params = [{transform_indices = @transform_0, window_bounds = array<i64: 16, 4>}, {pipeline_mode = #tpu.pipeline_mode<synchronous>, transform_indices = @transform_1, window_bounds = array<i64: 4, 128>}, {pipeline_mode = #tpu.pipeline_mode<synchronous>, transform_indices = @transform_2, window_bounds = array<i64: 1, 128>}, {transform_indices = @transform_3, window_bounds = array<i64: 16, 128>}]} {
    %c0 = arith.constant 0 : index
    %c0_0 = arith.constant 0 : index
    %0 = vector.load %arg1[%c0, %c0_0] : memref<16x4xf32, #tpu.memory_space<vmem>>, vector<16x4xf32>
    %c0_1 = arith.constant 0 : index
    %c0_2 = arith.constant 0 : index
    %1 = vector.load %arg2[%c0_1, %c0_2] : memref<4x128xf32, #tpu.memory_space<vmem>>, vector<4x128xf32>
    %cst = arith.constant dense<0.000000e+00> : vector<16x128xf32>
    %2 = tpu.matmul %0, %1, %cst {dimension_numbers = #tpu.dot_dimension_numbers<[1], [0], [0], [1], [0, 0, 1, 1], [], []>} : vector<16x4xf32>, vector<4x128xf32>, vector<16x128xf32> -> vector<16x128xf32>
    %c0_3 = arith.constant 0 : index
    %c0_4 = arith.constant 0 : index
    %3 = vector.load %arg3[%c0_3, %c0_4] : memref<1x128xf32, #tpu.memory_space<vmem>>, vector<1x128xf32>
    %4 = vector.broadcast %3 : vector<1x128xf32> to vector<16x128xf32>
    %5 = arith.addf %2, %4 : vector<16x128xf32>
    %6 = math.sin %5 : vector<16x128xf32>
    %c0_5 = arith.constant 0 : index
    %c0_6 = arith.constant 0 : index
    %7 = vector.load %arg4[%c0_5, %c0_6] : memref<16x128xf32, #tpu.memory_space<vmem>>, vector<16x128xf32>
    tpu.vector_store %arg4[%c0_5, %c0_6], %6 {strides = array<i32>} : memref<16x128xf32, #tpu.memory_space<vmem>>, vector<16x128xf32>,
    return
  }
  func.func @transform_0(%arg0: i32) -> (i32, i32) {
    %c0_i32 = arith.constant 0 : i32
    %c0_i32_0 = arith.constant 0 : i32
    return %arg0, %c0_i32 : i32, i32
  }
  func.func @transform_1(%arg0: i32) -> (i32, i32) {
    %c0_i32 = arith.constant 0 : i32
    %c0_i32_0 = arith.constant 0 : i32
    %c0_i32_1 = arith.constant 0 : i32
    return %c0_i32, %c0_i32_0 : i32, i32
  }
  func.func @transform_2(%arg0: i32) -> (i32, i32) {
    %c0_i32 = arith.constant 0 : i32
    %c0_i32_0 = arith.constant 0 : i32
    %c0_i32_1 = arith.constant 0 : i32
    return %c0_i32, %c0_i32_0 : i32, i32
  }
  func.func @transform_3(%arg0: i32) -> (i32, i32) {
    %c0_i32 = arith.constant 0 : i32
    %c0_i32_0 = arith.constant 0 : i32
    return %arg0, %c0_i32 : i32, i32
  }
}

</mosaic_0001>

<llo_original>
// kernel: tpu_custom_call.1
$region0: #{tpu_custom_call.1}
  #allocation0 [shape = 'u32[]', space=smem, size = 0x4, offset = 0x4, fixed_abs, tag = 'smem constant byte address 0x4 - core index']
  #allocation1 [shape = 'u32[144,128]{1,0:T(1,128)}', space=vmem, size = 0x12000, scoped, tag = 'internal scratch']
  %s0 = inlined_call_operand.vmem [shape: f32[16,4], index: 0, kind: input, shape index: {}]
  %s1 = inlined_call_operand.vmem [shape: f32[4,128], index: 1, kind: input, shape index: {}]
  %s2 = inlined_call_operand.vmem [shape: f32[1,128], index: 2, kind: input, shape index: {}]
  %s3 = inlined_call_operand.hbm [shape: f32[16,128], index: 3, kind: output, shape index: {}]
  %s4 = sld [smem:[#allocation0]]
  $region22: #{tpu_custom_call.1} parent=0
    _
  %s6 = ssub.s32 1, %s4
  %s7 = scalar_select 0, %s6, %s4
  $region1: #{tpu_custom_call.1} parent=0
    #allocation2 [shape = 'u8[8192]{0}', space=vmem, size = 0x2000, scoped, tag = 'output window, operand 0, single buffered']
    #allocation3 [shape = 's32[1]{0}', space=sflag, size = 0x4, scoped, tag = 'scoped memory for tpu_custom_call.1']
    %8 = vsyncpa [#allocation3], 0
    // Predicated region
    $region2: #{tpu_custom_call.1} parent=1 // pred_check
      _
    $region3: #{tpu_custom_call.1} parent=1 // pred_check_branch
      %10 = sbr.rel (0) target = $region5
    $region4: #{tpu_custom_call.1} parent=1 // pred_region
      _
    $region5: #{tpu_custom_call.1} parent=1 // pred_fallthru
      _
    // Predicated region
    $region6: #{tpu_custom_call.1} parent=1 // pred_check
      _
    $region7: #{tpu_custom_call.1} parent=1 // pred_check_branch
      %12 = sbr.rel (0) target = $region9
    $region8: #{tpu_custom_call.1} parent=1 // pred_region
      _
    $region9: #{tpu_custom_call.1} parent=1 // pred_fallthru
      _
    // Predicated region
    $region10: #{tpu_custom_call.1} parent=1 // pred_check
      _
    $region11: #{tpu_custom_call.1} parent=1 // pred_check_branch
      %14 = sbr.rel (0) target = $region13
    $region12: #{tpu_custom_call.1} parent=1 // pred_region
      _
    $region13: #{tpu_custom_call.1} parent=1 // pred_fallthru
      _
    %v15 = vld [vmem:[%s0] sm:$0xff]
    %v16 = vld [vmem:[%s0 + $0x8] sm:$0xff]
    %v17 = vld [vmem:[%s1] sm:$0xf]
    %v18 = vld [vmem:[%s2] sm:$0x1]
    %v20 = vlaneseq
    %v21 = vshrl.u32 %v20, 7
    %v22 = vsub.s32 0, %v21
    %v23 = vrot.slane %v18, %v22
    %vm25 = vcmask 31744
    %v27 = vsel %vm25, %v15, 0
    %v30 = vsel %vm25, %v16, 0
    %vm32 = vcmask 1043456
    %v34 = vsel %vm32, %v17, 0
    %36 = vmatprep.subr.mxu0 0.0
    %37 = vmatpush1.msra.mxu0 %v34
    %38 = vmatprep.subr.mxu0 0.0
    %39 = vmatpush1.msra.mxu0 0.0
    %40 = vmatprep.subr.mxu0 0.0
    %41 = vmatpush1.msra.mxu0 0.0
    %42 = vmatprep.subr.mxu0 0.0
    %43 = vmatpush1.msra.mxu0 0.0
    %44 = vmatprep.subr.mxu0 0.0
    %45 = vmatpush1.msra.mxu0 0.0
    %46 = vmatprep.subr.mxu0 0.0
    %47 = vmatpush1.msra.mxu0 0.0
    %48 = vmatprep.subr.mxu0 0.0
    %49 = vmatpush1.msra.mxu0 0.0
    %50 = vmatprep.subr.mxu0 0.0
    %51 = vmatpush1.msra.mxu0 0.0
    %52 = vmatprep.subr.mxu0 0.0
    %53 = vmatpush1.msra.mxu0 0.0
    %54 = vmatprep.subr.mxu0 0.0
    %55 = vmatpush1.msra.mxu0 0.0
    %56 = vmatprep.subr.mxu0 0.0
    %57 = vmatpush1.msra.mxu0 0.0
    %58 = vmatprep.subr.mxu0 0.0
    %59 = vmatpush1.msra.mxu0 0.0
    %60 = vmatprep.subr.mxu0 0.0
    %61 = vmatpush1.msra.mxu0 0.0
    %62 = vmatprep.subr.mxu0 0.0
    %63 = vmatpush1.msra.mxu0 0.0
    %64 = vmatprep.subr.mxu0 0.0
    %65 = vmatpush1.msra.mxu0 0.0
    %66 = vmatprep.subr.mxu0 0.0
    %67 = vmatpush1.msra.mxu0 0.0
    %68 = vmatprep.subr.mxu0 0.0
    %69 = vmatpush1.msra.mxu0 0.0
    %70 = vmatprep.subr.mxu0 0.0
    %71 = vmatpush1.msra.mxu0 0.0
    %72 = vmatprep.subr.mxu0 0.0
    %73 = vmatpush1.msra.mxu0 0.0
    %74 = vmatprep.subr.mxu0 0.0
    %75 = vmatpush1.msra.mxu0 0.0
    %76 = vmatprep.subr.mxu0 0.0
    %77 = vmatpush1.msra.mxu0 0.0
    %78 = vmatprep.subr.mxu0 0.0
    %79 = vmatpush1.msra.mxu0 0.0
    %80 = vmatprep.subr.mxu0 0.0
    %81 = vmatpush1.msra.mxu0 0.0
    %82 = vmatprep.subr.mxu0 0.0
    %83 = vmatpush1.msra.mxu0 0.0
    %84 = vmatprep.subr.mxu0 0.0
    %85 = vmatpush1.msra.mxu0 0.0
    %86 = vmatprep.subr.mxu0 0.0
    %87 = vmatpush1.msra.mxu0 0.0
    %88 = vmatprep.subr.mxu0 0.0
    %89 = vmatpush1.msra.mxu0 0.0
    %90 = vmatprep.subr.mxu0 0.0
    %91 = vmatpush1.msra.mxu0 0.0
    %92 = vmatprep.subr.mxu0 0.0
    %93 = vmatpush1.msra.mxu0 0.0
    %94 = vmatprep.subr.mxu0 0.0
    %95 = vmatpush1.msra.mxu0 0.0
    %96 = vmatprep.subr.mxu0 0.0
    %97 = vmatpush1.msra.mxu0 0.0
    %98 = vmatprep.subr.mxu0 0.0
    %99 = vmatpush1.msra.mxu0 0.0
    %100 = vmatprep.mubr.f32.mxu0 0.0
    %101 = vmatmul.mubr.f32.gmra.mrb[0].mxu0 %v27
    %v102 = vpop.f32.mrb[0].mxu0
    %v103 = vadd.f32 %v23, %v102
    %v104 = vpop.f32.mrb[0].mxu0
    %105 = vmatprep.mubr.f32.mxu0 0.0
    %106 = vmatmul.mubr.f32.gmra.mrb[0].mxu0 %v30
    %v107 = vpop.f32.mrb[0].mxu0
    %v108 = vadd.f32 %v23, %v107
    %v109 = vpop.f32.mrb[0].mxu0
    %110 = vdwg.mxu0
    %v111 = vand.u32 2147483647, %v103
    %vm112 = vcmp.le.f32.partialorder %v111, 0.7853982
    %vm113 = vcmp.lt.s32.totalorder %v103, 0
    %v114 = vand.u32 %v103, 2139095040
    %v115 = vshrl.u32 %v114, 23
    %v116 = vsub.s32 %v115, 127
    %v117 = vand.u32 2147483647, %v103
    %v118 = vand.u32 %v117, 8388607
    %v119 = vor.u32 %v118, 8388608
    %v120 = vsub.s32 0, %v119
    %v121 = vadd.s32 %v116, 1
    %vm122 = vcmp.gt.s32.totalorder %v121, 0
    %v123 = vsel %vm122, %v121, 0
    %v124 = vshrl.u32 %v123, 5
    %v125 = vand.u32 %v123, 31
    %v126 = vsub.s32 32, %v125
    %v127 = vshrl.u32 683565275, %v126
    %v128 = vshll.u32 683565275, %v125
    %v129 = vshrl.u32 2475754826, %v126
    %v130 = vor.u32 %v128, %v129
    %v131 = vshll.u32 2475754826, %v125
    %v132 = vshrl.u32 2131351028, %v126
    %v133 = vor.u32 %v131, %v132
    %v134 = vshll.u32 2131351028, %v125
    %v135 = vshrl.u32 2102212464, %v126
    %v136 = vor.u32 %v134, %v135
    %v137 = vshll.u32 2102212464, %v125
    %v138 = vshrl.u32 920167782, %v126
    %v139 = vor.u32 %v137, %v138
    %v140 = vshll.u32 920167782, %v125
    %v141 = vshrl.u32 1326507024, %v126
    %v142 = vor.u32 %v140, %v141
    %vm143 = vcmp.lt.s32.totalorder %v124, 1
    %vm144 = vcmp.lt.s32.totalorder %v124, 2
    %vm145 = vcmp.lt.s32.totalorder %v124, 3
    %vm146 = vcmp.lt.s32.totalorder %v124, 4
    %v147 = vsel %vm143, %v127, %v130
    %v148 = vsel %vm146, %v136, 2102212464
    %v149 = vsel %vm145, %v133, %v148
    %v150 = vsel %vm144, %v147, %v149
    %v151 = vsel %vm143, %v130, %v133
    %v152 = vsel %vm146, %v139, 920167782
    %v153 = vsel %vm145, %v136, %v152
    %v154 = vsel %vm144, %v151, %v153
    %v155 = vsel %vm143, %v133, %v136
    %v156 = vsel %vm146, %v142, 1326507024
    %v157 = vsel %vm145, %v139, %v156
    %v158 = vsel %vm144, %v155, %v157
    %v159 = vshll.u32 %v119, 8
    %v160 = vmul.u32.u64.compose %v159, %v158
    %v161 = vextract.low.u32 %v160
    %v162 = vextract.high.u32 %v160
    %v163 = vmul.u32.u64.compose %v159, %v154
    %v164 = vextract.low.u32 %v163
    %v165 = vextract.high.u32 %v163
    %v166 = vmul.u32 %v159, %v150
    %v167 = vadd.s32 %v162, %v164
    %vm168 = vc.u32 %v162, %v164
    %v169 = vadd.s32 %v165, 1
    %v170 = vsel %vm168, %v169, %v165
    %v171 = vadd.s32 %v166, %v170
    %v172 = vadd.s32 %v171, 536870912
    %v173 = vshrl.u32 %v172, 30
    %v174 = vshll.u32 %v173, 30
    %v175 = vsub.s32 %v171, %v174
    %vm176 = vcmp.lt.s32.totalorder %v175, 0
    %v177 = vsub.s32 0, %v175
    %v178 = vsel %vm176, %v177, %v175
    %v179 = vclz %v178
    %v180 = vsub.s32 %v179, 2
    %vm181 = vcmp.gt.s32.totalorder 0, %v180
    %v182 = vsel %vm181, 0, %v180
    %v183 = vsub.s32 32, %v182
    %v184 = vshll.u32 %v175, %v182
    %v185 = vshrl.u32 %v167, %v183
    %v186 = vor.u32 %v184, %v185
    %v187 = vsub.s32 4294967266, %v182
    %v188 = vadd.s32 %v187, 127
    %v189 = vshll.u32 %v188, 23
    %v190 = vor.u32 4788187, %v189
    %v191 = vand.u32 2147483647, %v190
    %v193 = vcvt.s32.f32 %v186
    %v194 = vmul.f32 %v193, %v191
    %v195 = vxor.u32 %v194, 2147483648
    %v196 = vsel %vm113, %v195, %v194
    %v197 = vsub.s32 4, %v173
    %v198 = vsel %vm113, %v197, %v173
    %v199 = vsel %vm112, %v103, %v196
    %v200 = vsel %vm112, 0, %v198
    %v201 = vcosq.f32.pop %v199
    %v202 = vsinq.f32.pop %v199
    %vm203 = vweird.f32 %v103
    %v204 = vadd.s32 %v200, 3
    %v205 = vand.u32 %v204, 3
    %vm206 = vcmp.lt.s32.totalorder %v205, 2
    %vm207 = vcmp.eq.s32.totalorder %v205, 0
    %v208 = vxor.u32 %v202, 2147483648
    %v209 = vsel %vm207, %v201, %v208
    %vm210 = vcmp.eq.s32.totalorder %v205, 2
    %v211 = vxor.u32 %v201, 2147483648
    %v212 = vsel %vm210, %v211, %v202
    %v213 = vsel %vm206, %v209, %v212
    %v214 = vsel %vm203, nan, %v213
    %v215 = vand.u32 2147483647, %v108
    %vm216 = vcmp.le.f32.partialorder %v215, 0.7853982
    %vm217 = vcmp.lt.s32.totalorder %v108, 0
    %v218 = vand.u32 %v108, 2139095040
    %v219 = vshrl.u32 %v218, 23
    %v220 = vsub.s32 %v219, 127
    %v221 = vand.u32 2147483647, %v108
    %v222 = vand.u32 %v221, 8388607
    %v223 = vor.u32 %v222, 8388608
    %v224 = vsub.s32 0, %v223
    %v225 = vadd.s32 %v220, 1
    %vm226 = vcmp.gt.s32.totalorder %v225, 0
    %v227 = vsel %vm226, %v225, 0
    %v228 = vshrl.u32 %v227, 5
    %v229 = vand.u32 %v227, 31
    %v230 = vsub.s32 32, %v229
    %v231 = vshrl.u32 683565275, %v230
    %v232 = vshll.u32 683565275, %v229
    %v233 = vshrl.u32 2475754826, %v230
    %v234 = vor.u32 %v232, %v233
    %v235 = vshll.u32 2475754826, %v229
    %v236 = vshrl.u32 2131351028, %v230
    %v237 = vor.u32 %v235, %v236
    %v238 = vshll.u32 2131351028, %v229
    %v239 = vshrl.u32 2102212464, %v230
    %v240 = vor.u32 %v238, %v239
    %v241 = vshll.u32 2102212464, %v229
    %v242 = vshrl.u32 920167782, %v230
    %v243 = vor.u32 %v241, %v242
    %v244 = vshll.u32 920167782, %v229
    %v245 = vshrl.u32 1326507024, %v230
    %v246 = vor.u32 %v244, %v245
    %vm247 = vcmp.lt.s32.totalorder %v228, 1
    %vm248 = vcmp.lt.s32.totalorder %v228, 2
    %vm249 = vcmp.lt.s32.totalorder %v228, 3
    %vm250 = vcmp.lt.s32.totalorder %v228, 4
    %v251 = vsel %vm247, %v231, %v234
    %v252 = vsel %vm250, %v240, 2102212464
    %v253 = vsel %vm249, %v237, %v252
    %v254 = vsel %vm248, %v251, %v253
    %v255 = vsel %vm247, %v234, %v237
    %v256 = vsel %vm250, %v243, 920167782
    %v257 = vsel %vm249, %v240, %v256
    %v258 = vsel %vm248, %v255, %v257
    %v259 = vsel %vm247, %v237, %v240
    %v260 = vsel %vm250, %v246, 1326507024
    %v261 = vsel %vm249, %v243, %v260
    %v262 = vsel %vm248, %v259, %v261
    %v263 = vshll.u32 %v223, 8
    %v264 = vmul.u32.u64.compose %v263, %v262
    %v265 = vextract.low.u32 %v264
    %v266 = vextract.high.u32 %v264
    %v267 = vmul.u32.u64.compose %v263, %v258
    %v268 = vextract.low.u32 %v267
    %v269 = vextract.high.u32 %v267
    %v270 = vmul.u32 %v263, %v254
    %v271 = vadd.s32 %v266, %v268
    %vm272 = vc.u32 %v266, %v268
    %v273 = vadd.s32 %v269, 1
    %v274 = vsel %vm272, %v273, %v269
    %v275 = vadd.s32 %v270, %v274
    %v276 = vadd.s32 %v275, 536870912
    %v277 = vshrl.u32 %v276, 30
    %v278 = vshll.u32 %v277, 30
    %v279 = vsub.s32 %v275, %v278
    %vm280 = vcmp.lt.s32.totalorder %v279, 0
    %v281 = vsub.s32 0, %v279
    %v282 = vsel %vm280, %v281, %v279
    %v283 = vclz %v282
    %v284 = vsub.s32 %v283, 2
    %vm285 = vcmp.gt.s32.totalorder 0, %v284
    %v286 = vsel %vm285, 0, %v284
    %v287 = vsub.s32 32, %v286
    %v288 = vshll.u32 %v279, %v286
    %v289 = vshrl.u32 %v271, %v287
    %v290 = vor.u32 %v288, %v289
    %v291 = vsub.s32 4294967266, %v286
    %v292 = vadd.s32 %v291, 127
    %v293 = vshll.u32 %v292, 23
    %v294 = vor.u32 4788187, %v293
    %v295 = vand.u32 2147483647, %v294
    %v297 = vcvt.s32.f32 %v290
    %v298 = vmul.f32 %v297, %v295
    %v299 = vxor.u32 %v298, 2147483648
    %v300 = vsel %vm217, %v299, %v298
    %v301 = vsub.s32 4, %v277
    %v302 = vsel %vm217, %v301, %v277
    %v303 = vsel %vm216, %v108, %v300
    %v304 = vsel %vm216, 0, %v302
    %v305 = vcosq.f32.pop %v303
    %v306 = vsinq.f32.pop %v303
    %vm307 = vweird.f32 %v108
    %v308 = vadd.s32 %v304, 3
    %v309 = vand.u32 %v308, 3
    %vm310 = vcmp.lt.s32.totalorder %v309, 2
    %vm311 = vcmp.eq.s32.totalorder %v309, 0
    %v312 = vxor.u32 %v306, 2147483648
    %v313 = vsel %vm311, %v305, %v312
    %vm314 = vcmp.eq.s32.totalorder %v309, 2
    %v315 = vxor.u32 %v305, 2147483648
    %v316 = vsel %vm314, %v315, %v306
    %v317 = vsel %vm310, %v313, %v316
    %v318 = vsel %vm307, nan, %v317
    %319 = vst [vmem:[#allocation2] sm:$0xff] %v214
    %320 = vst [vmem:[#allocation2 + $0x8] sm:$0xff] %v318
    // Predicated region
    $region14: #{tpu_custom_call.1} parent=1 // pred_check
      _
    $region15: #{tpu_custom_call.1} parent=1 // pred_check_branch
      %322 = sbr.rel (0) target = $region17
    $region16: #{tpu_custom_call.1} parent=1 // pred_region
      %s324 = ssub.s32 256, 256
      %325 = vsyncadd [#allocation3], %s324
      %s326 = sshll.u32 [#allocation2], 4
      %s327 = int_to_ptr.vmem [resolvable:$true] %s326
      %332 = dma.vmem_to_hbm [thread:$0]  %s327, 256, %s3, [#allocation3], 128, 128, 8
    $region17: #{tpu_custom_call.1} parent=1 // pred_fallthru
      _
    // Predicated region
    $region18: #{tpu_custom_call.1} parent=1 // pred_check
      _
    $region19: #{tpu_custom_call.1} parent=1 // pred_check_branch
      %334 = sbr.rel (0) target = $region21
    $region20: #{tpu_custom_call.1} parent=1 // pred_region
      %335 = dma.done [#allocation3], 256
    $region21: #{tpu_custom_call.1} parent=1 // pred_fallthru
      _
    %336 = vsyncpa [#allocation3], 1

</llo_original>
